<compile_context>
chip_gen: v7x
topology: tpu7x:2x2x1
jax: 0.10.0
libtpu: 0.0.40
codegen_flags: <defaults>
</compile_context>

<pallas_src>
import jax
import jax.numpy as jnp
import numpy as np
from jax.experimental import pallas as pl
from jax.experimental.pallas import tpu as pltpu


# ----------------------------------------------------------------------------
# Pallas kernel: fused (patches @ W^T) + bias + positional embedding
# ----------------------------------------------------------------------------
def _patch_embed_kernel(p_ref, w_ref, b_ref, pos_ref, o_ref):
    # p_ref  : (bm, Kp)  bf16  im2col patch rows (zero-padded along Kp)
    # w_ref  : (Kp, Cp)  bf16  transposed conv weight (zero-padded, resident)
    # b_ref  : (1,  Cp)  f32   conv bias (resident)
    # pos_ref: (bm, Cp)  f32   positional embeddings for these token rows
    # o_ref  : (bm, Cp)  f32   output embeddings
    acc = jnp.dot(p_ref[...], w_ref[...], preferred_element_type=jnp.float32)
    o_ref[...] = acc + b_ref[...] + pos_ref[...]


# ----------------------------------------------------------------------------
# Wrapper glue (pure layout, no FLOPs)
# ----------------------------------------------------------------------------
def _round_up(x, m):
    return (x + m - 1) // m * m


def _im2col(x, k, stride, padding):
    """(B, Cin, Hin, Win) -> (B, H*W, Cin*k*k) patches (dtype preserved),
    flattened in PyTorch Conv2d weight order (cin major, then ki, then kj)."""
    B, Cin, Hin, Win = x.shape
    if padding:
        x = jnp.pad(x, ((0, 0), (0, 0), (padding, padding), (padding, padding)))
    Hp, Wp = Hin + 2 * padding, Win + 2 * padding
    H = (Hp - k) // stride + 1
    W = (Wp - k) // stride + 1
    cols = []
    for di in range(k):
        for dj in range(k):
            cols.append(
                jax.lax.slice(
                    x,
                    (0, 0, di, dj),
                    (B, Cin, di + (H - 1) * stride + 1, dj + (W - 1) * stride + 1),
                    (1, 1, stride, stride),
                ))  # each (B, Cin, H, W)
    p = jnp.stack(cols, axis=2)                              # (B, Cin, k*k, H, W)
    p = p.transpose(0, 3, 4, 1, 2).reshape(B, H * W, Cin * k * k)
    return p, H, W


def _choose_block_m(m_total, ntok_p, kp, cp, target=512, vmem_budget=24 << 20):
    """Pick the token-row block bm such that:
       * bm divides ntok_p (a block never straddles two images' positional rows)
       * bm is a multiple of 8 (sublane-aligned), bm <= target (~roofline regime)
       * double-buffered per-step VMEM footprint stays under the budget
       * >= 2 grid steps whenever the shape allows (keeps both v7x TCs busy)."""
    def footprint(bm):
        # double-buffered bf16 patches + f32 pos + f32 out, plus resident W/bias
        return 2 * (bm * kp * 2 + bm * cp * 4 + bm * cp * 4) + kp * cp * 2 + cp * 4

    divisors = [d for d in range(8, min(ntok_p, target) + 1, 8) if ntok_p % d == 0]
    if not divisors:
        divisors = [ntok_p]
    divisors.sort(reverse=True)

    bm = divisors[-1]
    for d in divisors:                      # largest divisor fitting VMEM budget
        if footprint(d) <= vmem_budget:
            bm = d
            break

    if m_total // bm < 2:                   # v7x: prefer >= 2 parallel grid steps
        for d in divisors:
            if d <= bm and m_total // d >= 2 and footprint(d) <= vmem_budget:
                bm = d
                break
    return bm


def patch_embedding_pallas(x, weight, bias, pos_emb, *, stride, padding,
                           emb_dropout=0.0):
    """x: (B, Cin, Hin, Win); weight: (Cout, Cin, k, k); bias: (Cout,);
    pos_emb: (1, image_size*image_size, Cout). Returns (embeddings, H, W)."""
    if emb_dropout != 0.0:
        # TODO(synk): stochastic dropout via pltpu.prng_* not implemented.
        raise NotImplementedError("emb_dropout > 0 not supported (inference only)")

    Cout, Cin, k, _ = weight.shape
    B = x.shape[0]

    # --- cast FIRST, then im2col: the only materialized intermediate is bf16 ---
    patches, H, W = _im2col(x.astype(jnp.bfloat16), k, stride, padding)
    Ntok = H * W
    Kdim = Cin * k * k
    assert pos_emb.shape[1] == Ntok, "position embedding length must equal H*W"

    # --- lane/sublane-dense padding (exact: zeros contribute nothing) ---
    Kp = _round_up(Kdim, 128)           # contraction depth -> full-width MXU feed
    Cp = _round_up(Cout, 128)           # output lanes -> unmasked vst
    Ntok_p = _round_up(Ntok, 8)         # sublane-aligned token rows per image

    # --- flatten (B, Ntok) into a single M row dimension ---
    patches = jnp.pad(patches, ((0, 0), (0, Ntok_p - Ntok), (0, Kp - Kdim)))
    patches = patches.reshape(B * Ntok_p, Kp)                          # bf16

    w_t = weight.reshape(Cout, Kdim).T.astype(jnp.bfloat16)            # (Kdim, Cout)
    w_t = jnp.pad(w_t, ((0, Kp - Kdim), (0, Cp - Cout)))               # (Kp, Cp)
    bias2 = jnp.pad(bias.astype(jnp.float32).reshape(1, Cout),
                    ((0, 0), (0, Cp - Cout)))                          # (1, Cp)
    pos2 = jnp.pad(pos_emb.astype(jnp.float32).reshape(Ntok, Cout),
                   ((0, Ntok_p - Ntok), (0, Cp - Cout)))               # (Ntok_p, Cp)

    M = B * Ntok_p
    bm = _choose_block_m(M, Ntok_p, Kp, Cp)
    nblk_per_img = Ntok_p // bm
    grid = (M // bm,)

    out = pl.pallas_call(
        _patch_embed_kernel,
        out_shape=jax.ShapeDtypeStruct((M, Cp), jnp.float32),
        grid_spec=pltpu.PrefetchScalarGridSpec(
            num_scalar_prefetch=0,
            grid=grid,
            in_specs=[
                pl.BlockSpec((bm, Kp), lambda m: (m, 0)),              # patches
                pl.BlockSpec((Kp, Cp), lambda m: (0, 0)),              # W^T (resident)
                pl.BlockSpec((1, Cp), lambda m: (0, 0)),               # bias (resident)
                pl.BlockSpec((bm, Cp),
                             lambda m: (m % nblk_per_img, 0)),         # pos emb
            ],
            out_specs=pl.BlockSpec((bm, Cp), lambda m: (m, 0)),
        ),
        compiler_params=pltpu.CompilerParams(
            dimension_semantics=("parallel",),
            vmem_limit_bytes=32 * 1024 * 1024),
    )(patches, w_t, bias2, pos2)

    # Strip padding (no-op when Ntok, Cout are already aligned).
    out = out.reshape(B, Ntok_p, Cp)[:, :Ntok, :Cout]
    # Dropout(p=0.0) -> identity.
    return out, H, W


# ----------------------------------------------------------------------------
# Pure-JAX reference (mirrors the PyTorch forward)
# ----------------------------------------------------------------------------
def patch_embedding_reference(x, weight, bias, pos_emb, *, stride, padding):
    y = jax.lax.conv_general_dilated(
        x, weight, (stride, stride), [(padding, padding), (padding, padding)],
        dimension_numbers=("NCHW", "OIHW", "NCHW"))
    y = y + bias[None, :, None, None]
    B, C, H, W = y.shape
    emb = y.reshape(B, C, H * W).transpose(0, 2, 1) + pos_emb
    return emb, H, W


# ----------------------------------------------------------------------------
if __name__ == "__main__":
    # Small shapes consistent with the module:
    #   x: (B=2, in_channels=4, 16, 16), patch conv k=4, stride=4, pad=0
    #   -> H = W = 4, image_size = 4, out_channels = 32
    B, Cin, Hin, Win = 2, 4, 16, 16
    Cout, K, S, P = 32, 4, 4, 0
    image_size = (Hin + 2 * P - K) // S + 1          # = 4

    key = jax.random.PRNGKey(0)
    k1, k2, k3, k4 = jax.random.split(key, 4)
    x = jax.random.normal(k1, (B, Cin, Hin, Win), jnp.float32)
    weight = jax.random.normal(k2, (Cout, Cin, K, K), jnp.float32) * 0.1
    bias = jax.random.normal(k3, (Cout,), jnp.float32) * 0.1
    pos = jax.random.normal(k4, (1, image_size * image_size, Cout), jnp.float32) * 0.02

    emb, H, W = patch_embedding_pallas(x, weight, bias, pos, stride=S, padding=P,
                                       emb_dropout=0.0)
    emb = jax.block_until_ready(emb)

    ref_emb, ref_H, ref_W = patch_embedding_reference(x, weight, bias, pos,
                                                      stride=S, padding=P)
    assert (H, W) == (ref_H, ref_W)
    assert emb.shape == (B, image_size * image_size, Cout)
    np.testing.assert_allclose(np.asarray(emb), np.asarray(ref_emb),
                               rtol=2e-2, atol=2e-2)
    print("KERNEL_OK")
</pallas_src>

<mosaic_0001>
module attributes {stable_mosaic.version = 11 : i64} {
  func.func @_patch_embed_kernel(%arg0: i32, %arg1: memref<16x128xbf16, #tpu.memory_space<vmem>>, %arg2: memref<128x128xbf16, #tpu.memory_space<vmem>>, %arg3: memref<1x128xf32, #tpu.memory_space<vmem>>, %arg4: memref<16x128xf32, #tpu.memory_space<vmem>>, %arg5: memref<16x128xf32, #tpu.memory_space<vmem>>) attributes {dimension_semantics = [#tpu.dimension_semantics<parallel>], iteration_bounds = array<i64: 2>, scalar_prefetch = 0 : i64, scratch_operands = 0 : i64, tpu.core_type = #tpu.core_type<tc>, window_params = [{transform_indices = @transform_0, window_bounds = array<i64: 16, 128>}, {pipeline_mode = #tpu.pipeline_mode<synchronous>, transform_indices = @transform_1, window_bounds = array<i64: 128, 128>}, {pipeline_mode = #tpu.pipeline_mode<synchronous>, transform_indices = @transform_2, window_bounds = array<i64: 1, 128>}, {transform_indices = @transform_3, window_bounds = array<i64: 16, 128>}, {transform_indices = @transform_4, window_bounds = array<i64: 16, 128>}]} {
    %c0 = arith.constant 0 : index
    %c0_0 = arith.constant 0 : index
    %0 = vector.load %arg1[%c0, %c0_0] : memref<16x128xbf16, #tpu.memory_space<vmem>>, vector<16x128xbf16>
    %c0_1 = arith.constant 0 : index
    %c0_2 = arith.constant 0 : index
    %1 = vector.load %arg2[%c0_1, %c0_2] : memref<128x128xbf16, #tpu.memory_space<vmem>>, vector<128x128xbf16>
    %cst = arith.constant dense<0.000000e+00> : vector<16x128xf32>
    %2 = tpu.matmul %0, %1, %cst {dimension_numbers = #tpu.dot_dimension_numbers<[1], [0], [0], [1], [0, 0, 1, 1], [], []>} : vector<16x128xbf16>, vector<128x128xbf16>, vector<16x128xf32> -> vector<16x128xf32>
    %c0_3 = arith.constant 0 : index
    %c0_4 = arith.constant 0 : index
    %3 = vector.load %arg3[%c0_3, %c0_4] : memref<1x128xf32, #tpu.memory_space<vmem>>, vector<1x128xf32>
    %4 = vector.broadcast %3 : vector<1x128xf32> to vector<16x128xf32>
    %5 = arith.addf %2, %4 : vector<16x128xf32>
    %c0_5 = arith.constant 0 : index
    %c0_6 = arith.constant 0 : index
    %6 = vector.load %arg4[%c0_5, %c0_6] : memref<16x128xf32, #tpu.memory_space<vmem>>, vector<16x128xf32>
    %7 = arith.addf %5, %6 : vector<16x128xf32>
    %c0_7 = arith.constant 0 : index
    %c0_8 = arith.constant 0 : index
    %8 = vector.load %arg5[%c0_7, %c0_8] : memref<16x128xf32, #tpu.memory_space<vmem>>, vector<16x128xf32>
    tpu.vector_store %arg5[%c0_7, %c0_8], %7 {strides = array<i32>} : memref<16x128xf32, #tpu.memory_space<vmem>>, vector<16x128xf32>,
    return
  }
  func.func @transform_0(%arg0: i32) -> (i32, i32) {
    %c0_i32 = arith.constant 0 : i32
    %c0_i32_0 = arith.constant 0 : i32
    return %arg0, %c0_i32 : i32, i32
  }
  func.func @transform_1(%arg0: i32) -> (i32, i32) {
    %c0_i32 = arith.constant 0 : i32
    %c0_i32_0 = arith.constant 0 : i32
    %c0_i32_1 = arith.constant 0 : i32
    return %c0_i32, %c0_i32_0 : i32, i32
  }
  func.func @transform_2(%arg0: i32) -> (i32, i32) {
    %c0_i32 = arith.constant 0 : i32
    %c0_i32_0 = arith.constant 0 : i32
    %c0_i32_1 = arith.constant 0 : i32
    return %c0_i32, %c0_i32_0 : i32, i32
  }
  func.func @transform_3(%arg0: i32) -> (i32, i32) {
    %c1_i32 = arith.constant 1 : i32
    %c0_i32 = arith.constant 0 : i32
    %0 = arith.cmpi eq, %c1_i32, %c0_i32 : i32
    %c1_i32_0 = arith.constant 1 : i32
    %1 = arith.select %0, %c1_i32_0, %c1_i32 : i32
    %2 = arith.remsi %arg0, %1 : i32
    %c0_i32_1 = arith.constant 0 : i32
    %3 = arith.cmpi ne, %2, %c0_i32_1 : i32
    %c0_i32_2 = arith.constant 0 : i32
    %4 = arith.cmpi slt, %2, %c0_i32_2 : i32
    %c0_i32_3 = arith.constant 0 : i32
    %5 = arith.cmpi slt, %1, %c0_i32_3 : i32
    %6 = arith.xori %4, %5 : i1
    %7 = arith.andi %6, %3 : i1
    %8 = arith.addi %2, %1 : i32
    %9 = arith.select %7, %8, %2 : i32
    %c0_i32_4 = arith.constant 0 : i32
    %c0_i32_5 = arith.constant 0 : i32
    return %9, %c0_i32_4 : i32, i32
  }
  func.func @transform_4(%arg0: i32) -> (i32, i32) {
    %c0_i32 = arith.constant 0 : i32
    %c0_i32_0 = arith.constant 0 : i32
    return %arg0, %c0_i32 : i32, i32
  }
}

</mosaic_0001>

<llo_original>
// kernel: tpu_custom_call.1
$region0: #{tpu_custom_call.1}
  #allocation0 [shape = 'u32[]', space=smem, size = 0x4, offset = 0x4, fixed_abs, tag = 'smem constant byte address 0x4 - core index']
  #allocation1 [shape = 'u32[144,128]{1,0:T(1,128)}', space=vmem, size = 0x12000, scoped, tag = 'internal scratch']
  %s0 = inlined_call_operand.hbm [shape: bf16[32,128], index: 0, kind: input, shape index: {}]
  %s1 = inlined_call_operand.hbm [shape: bf16[128,128], index: 1, kind: input, shape index: {}]
  %s2 = inlined_call_operand.vmem [shape: f32[1,128], index: 2, kind: input, shape index: {}]
  %s3 = inlined_call_operand.hbm [shape: f32[16,128], index: 3, kind: input, shape index: {}]
  %s4 = inlined_call_operand.hbm [shape: f32[32,128], index: 4, kind: output, shape index: {}]
  %s5 = sld [smem:[#allocation0]]
  $region61: #{tpu_custom_call.1} parent=0
    _
  %s7 = ssub.s32 1, %s5
  %s8 = scalar_select 0, %s7, %s5
  $region1: #{tpu_custom_call.1} parent=0
    #allocation2 [shape = 'u8[8192]{0}', space=vmem, size = 0x2000, scoped, tag = 'input window, operand 0']
    #allocation3 [shape = 's32[2]{0}', space=sflag, size = 0x8, scoped, tag = 'scoped memory for tpu_custom_call.1']
    #allocation4 [shape = 's32[2]{0}', space=sflag, size = 0x8, scoped, tag = 'scoped memory for tpu_custom_call.1']
    #allocation5 [shape = 'u8[32768]{0}', space=vmem, size = 0x8000, scoped, tag = 'input window, operand 1, single buffered']
    #allocation6 [shape = 's32[1]{0}', space=sflag, size = 0x4, scoped, tag = 'scoped memory for tpu_custom_call.1']
    #allocation7 [shape = 'u8[8192]{0}', space=vmem, size = 0x2000, scoped, tag = 'input window, operand 3, single buffered']
    #allocation8 [shape = 'u8[16384]{0}', space=vmem, size = 0x4000, scoped, tag = 'output window, operand 0']
    %9 = vsyncpa [#allocation3], 0
    %s10 = scalar_lea.sflag [#allocation3], 1
    %11 = vsyncpa %s10, 0
    %12 = vsyncpa [#allocation6], 0
    %13 = vsyncpa [#allocation4], 0
    %s14 = scalar_lea.sflag [#allocation4], 1
    %15 = vsyncpa %s14, 0
    loop: start=0, step=1, limit=4
    $region2: #{tpu_custom_call.1} parent=1 // loop_pre_header
      _
    $region3: #{tpu_custom_call.1} parent=1 // loop_header
      %s17 = sphi 0, %s21
      %p18 = scmp.ge.s32.totalorder %s17, 4
      %s27 = sphi 0, %s29
      %s30 = sphi 0, %s27
      %s31 = sphi 0, %s30
      %s47 = sphi 0, %s31
      %s51 = sphi 0, %s51
      %s53 = sphi 0, %s51
      %s54 = sphi 0, %s53
      %s68 = sphi 0, %s54
      %s72 = sphi 0, %s72
      %s74 = sphi 0, %s72
      %s75 = sphi 0, %s74
      %s89 = sphi 0, %s75
      %s93 = sphi 0, %s93
      %s95 = sphi 0, %s93
      %s96 = sphi 0, %s95
      %s110 = sphi 0, %s96
      %s116 = sphi 0, %s118
      %s119 = sphi 0, %s116
      %s120 = sphi 0, %s119
      %s136 = sphi 0, %s120
    $region4: #{tpu_custom_call.1} parent=1 // loop_header_branch
      %20 = sbr.rel (%p18) target = $region8
    $region5: #{tpu_custom_call.1} parent=1 // loop_body
      %s22 = ssub.s32 %s17, 1
      %s23 = ssub.s32 %s17, 2
      %s24 = sadd.s32 %s17, 1
      %s25 = ssub.s32 %s17, %s24
      %p26 = scmp.eq.s32.totalorder %s25, 0
      %s28 = sadd.s32 %s27, 1
      %s29 = scalar_select %p26, %s27, %s28
      %p32 = pneg %p26
      %p33 = scmp.eq.s32.totalorder %s17, 1
      %p34 = por %p32, %p33
      %p35 = scmp.ne.s32.totalorder %s27, %s30
      %p36 = scmp.eq.s32.totalorder %s17, 0
      %p37 = por %p35, %p36
      %p38 = scmp.ne.s32.totalorder %s27, %s30
      %p39 = scmp.eq.s32.totalorder %s22, 1
      %p40 = por %p38, %p39
      %p41 = scmp.ne.s32.totalorder %s30, %s31
      %p42 = scmp.eq.s32.totalorder %s22, 0
      %p43 = por %p41, %p42
      %p44 = scmp.ne.s32.totalorder %s30, %s31
      %p45 = scmp.eq.s32.totalorder %s23, 1
      %p46 = por %p44, %p45
      %p48 = scmp.ne.s32.totalorder %s31, %s47
      %p49 = scmp.eq.s32.totalorder %s23, 0
      %p50 = por %p48, %p49
      %s52 = sadd.s32 %s51, 1
      %p55 = scmp.eq.s32.totalorder %s17, 1
      %p56 = scmp.ne.s32.totalorder %s51, %s53
      %p57 = scmp.eq.s32.totalorder %s17, 0
      %p58 = por %p56, %p57
      %p59 = scmp.ne.s32.totalorder %s51, %s53
      %p60 = scmp.eq.s32.totalorder %s22, 1
      %p61 = por %p59, %p60
      %p62 = scmp.ne.s32.totalorder %s53, %s54
      %p63 = scmp.eq.s32.totalorder %s22, 0
      %p64 = por %p62, %p63
      %p65 = scmp.ne.s32.totalorder %s53, %s54
      %p66 = scmp.eq.s32.totalorder %s23, 1
      %p67 = por %p65, %p66
      %p69 = scmp.ne.s32.totalorder %s54, %s68
      %p70 = scmp.eq.s32.totalorder %s23, 0
      %p71 = por %p69, %p70
      %s73 = sadd.s32 %s72, 1
      %p76 = scmp.eq.s32.totalorder %s17, 1
      %p77 = scmp.ne.s32.totalorder %s72, %s74
      %p78 = scmp.eq.s32.totalorder %s17, 0
      %p79 = por %p77, %p78
      %p80 = scmp.ne.s32.totalorder %s72, %s74
      %p81 = scmp.eq.s32.totalorder %s22, 1
      %p82 = por %p80, %p81
      %p83 = scmp.ne.s32.totalorder %s74, %s75
      %p84 = scmp.eq.s32.totalorder %s22, 0
      %p85 = por %p83, %p84
      %p86 = scmp.ne.s32.totalorder %s74, %s75
      %p87 = scmp.eq.s32.totalorder %s23, 1
      %p88 = por %p86, %p87
      %p90 = scmp.ne.s32.totalorder %s75, %s89
      %p91 = scmp.eq.s32.totalorder %s23, 0
      %p92 = por %p90, %p91
      %s94 = sadd.s32 %s93, 1
      %p97 = scmp.eq.s32.totalorder %s17, 1
      %p98 = scmp.ne.s32.totalorder %s93, %s95
      %p99 = scmp.eq.s32.totalorder %s17, 0
      %p100 = por %p98, %p99
      %p101 = scmp.ne.s32.totalorder %s93, %s95
      %p102 = scmp.eq.s32.totalorder %s22, 1
      %p103 = por %p101, %p102
      %p104 = scmp.ne.s32.totalorder %s95, %s96
      %p105 = scmp.eq.s32.totalorder %s22, 0
      %p106 = por %p104, %p105
      %p107 = scmp.ne.s32.totalorder %s95, %s96
      %p108 = scmp.eq.s32.totalorder %s23, 1
      %p109 = por %p107, %p108
      %p111 = scmp.ne.s32.totalorder %s96, %s110
      %p112 = scmp.eq.s32.totalorder %s23, 0
      %p113 = por %p111, %p112
      %s114 = ssub.s32 %s17, %s24
      %p115 = scmp.eq.s32.totalorder %s114, 0
      %s117 = sadd.s32 %s116, 1
      %s118 = scalar_select %p115, %s116, %s117
      %p121 = pneg %p115
      %p122 = scmp.eq.s32.totalorder %s17, 1
      %p123 = por %p121, %p122
      %p124 = scmp.ne.s32.totalorder %s116, %s119
      %p125 = scmp.eq.s32.totalorder %s17, 0
      %p126 = por %p124, %p125
      %p127 = scmp.ne.s32.totalorder %s116, %s119
      %p128 = scmp.eq.s32.totalorder %s22, 1
      %p129 = por %p127, %p128
      %p130 = scmp.ne.s32.totalorder %s119, %s120
      %p131 = scmp.eq.s32.totalorder %s22, 0
      %p132 = por %p130, %p131
      %p133 = scmp.ne.s32.totalorder %s119, %s120
      %p134 = scmp.eq.s32.totalorder %s23, 1
      %p135 = por %p133, %p134
      %p137 = scmp.ne.s32.totalorder %s120, %s136
      %p138 = scmp.eq.s32.totalorder %s23, 0
      %p139 = por %p137, %p138
      %p140 = scmp.le.s32.totalorder 1, %s17
      %p141 = scmp.lt.s32.totalorder %s17, 3
      %p142 = pnand %p140, %p141
      %p143 = pneg %p142
      // Predicated region
      $region9: #{tpu_custom_call.1} parent=5 // pred_check
        _
      $region10: #{tpu_custom_call.1} parent=5 // pred_check_branch
        %145 = sbr.rel (%p142) target = $region12
      $region11: #{tpu_custom_call.1} parent=5 // pred_region
        %s146 = ssub.s32 %s17, 1
        // Predicated region
        $region13: #{tpu_custom_call.1} parent=11 // pred_check
          %p147 = pneg %p64
        $region14: #{tpu_custom_call.1} parent=11 // pred_check_branch
          %149 = sbr.rel (%p147) target = $region16
        $region15: #{tpu_custom_call.1} parent=11 // pred_region
          %s151 = ssub.s32 1024, 1024
          %152 = vsyncadd [#allocation6], %s151
          %s153 = sshll.u32 [#allocation5], 4
          %s154 = int_to_ptr.vmem [resolvable:$true] %s153
          %159 = dma.hbm_to_vmem [thread:$0]  %s1, 1024, %s154, [#allocation6], 64, 64, 4
        $region16: #{tpu_custom_call.1} parent=11 // pred_fallthru
          _
        // Predicated region
        $region17: #{tpu_custom_call.1} parent=11 // pred_check
          %p160 = pneg %p85
        $region18: #{tpu_custom_call.1} parent=11 // pred_check_branch
          %162 = sbr.rel (%p160) target = $region20
        $region19: #{tpu_custom_call.1} parent=11 // pred_region
          _
        $region20: #{tpu_custom_call.1} parent=11 // pred_fallthru
          _
        // Predicated region
        $region21: #{tpu_custom_call.1} parent=11 // pred_check
          %p163 = pneg %p106
        $region22: #{tpu_custom_call.1} parent=11 // pred_check_branch
          %165 = sbr.rel (%p163) target = $region24
        $region23: #{tpu_custom_call.1} parent=11 // pred_region
          %s167 = ssub.s32 256, 256
          %168 = vsyncadd [#allocation6], %s167
          %s169 = sshll.u32 [#allocation7], 4
          %s170 = int_to_ptr.vmem [resolvable:$true] %s169
          %175 = dma.hbm_to_vmem [thread:$0]  %s3, 256, %s170, [#allocation6], 128, 128, 8
        $region24: #{tpu_custom_call.1} parent=11 // pred_fallthru
          _
      $region12: #{tpu_custom_call.1} parent=5 // pred_fallthru
        _
      %p176 = scmp.lt.s32.totalorder %s17, 2
      // Predicated region
      $region25: #{tpu_custom_call.1} parent=5 // pred_check
        %p177 = pneg %p176
      $region26: #{tpu_custom_call.1} parent=5 // pred_check_branch
        %179 = sbr.rel (%p177) target = $region28
      $region27: #{tpu_custom_call.1} parent=5 // pred_region
        // Predicated region
        $region29: #{tpu_custom_call.1} parent=27 // pred_check
          %p180 = pneg %p37
        $region30: #{tpu_custom_call.1} parent=27 // pred_check_branch
          %182 = sbr.rel (%p180) target = $region32
        $region31: #{tpu_custom_call.1} parent=27 // pred_region
          %s183 = sand.u32 %s27, 1
          %s184 = scalar_lea.sflag [#allocation3], %s183
          %s185 = sand.u32 %s27, 1
          %s186 = smul.addr %s185, 8
          %s187 = scalar_lea.vmem [#allocation2], %s186
          %s188 = smul.u32 2, %s17
          %s190 = ssub.s32 128, 128
          %191 = vsyncadd %s184, %s190
          %s192 = smul.addr %s188, 64
          %s193 = scalar_lea.hbm %s0, %s192
          %s194 = sshll.u32 %s187, 4
          %s195 = int_to_ptr.vmem [resolvable:$true] %s194
          %200 = dma.hbm_to_vmem [thread:$0]  %s193, 128, %s195, %s184, 64, 64, 4
        $region32: #{tpu_custom_call.1} parent=27 // pred_fallthru
          _
      $region28: #{tpu_custom_call.1} parent=5 // pred_fallthru
        _
      %p201 = scmp.le.s32.totalorder 1, %s17
      %p202 = scmp.lt.s32.totalorder %s17, 3
      %p203 = pnand %p201, %p202
      %p204 = pneg %p203
      // Predicated region
      $region33: #{tpu_custom_call.1} parent=5 // pred_check
        _
      $region34: #{tpu_custom_call.1} parent=5 // pred_check_branch
        %206 = sbr.rel (%p203) target = $region36
      $region35: #{tpu_custom_call.1} parent=5 // pred_region
        %s207 = ssub.s32 %s17, 1
        %s208 = sand.u32 %s30, 1
        %s209 = scalar_lea.sflag [#allocation3], %s208
        %s210 = sand.u32 %s30, 1
        %s211 = smul.addr %s210, 8
        %s212 = scalar_lea.vmem [#allocation2], %s211
        // Predicated region
        $region37: #{tpu_custom_call.1} parent=35 // pred_check
          %p213 = pneg %p43
        $region38: #{tpu_custom_call.1} parent=35 // pred_check_branch
          %215 = sbr.rel (%p213) target = $region40
        $region39: #{tpu_custom_call.1} parent=35 // pred_region
          %216 = dma.done %s209, 128
        $region40: #{tpu_custom_call.1} parent=35 // pred_fallthru
          _
        // Predicated region
        $region41: #{tpu_custom_call.1} parent=35 // pred_check
          %p217 = pneg %p64
        $region42: #{tpu_custom_call.1} parent=35 // pred_check_branch
          %219 = sbr.rel (%p217) target = $region44
        $region43: #{tpu_custom_call.1} parent=35 // pred_region
          %220 = dma.done [#allocation6], 1024
        $region44: #{tpu_custom_call.1} parent=35 // pred_fallthru
          _
        // Predicated region
        $region45: #{tpu_custom_call.1} parent=35 // pred_check
          %p221 = pneg %p106
        $region46: #{tpu_custom_call.1} parent=35 // pred_check_branch
          %223 = sbr.rel (%p221) target = $region48
        $region47: #{tpu_custom_call.1} parent=35 // pred_region
          %224 = dma.done [#allocation6], 256
        $region48: #{tpu_custom_call.1} parent=35 // pred_fallthru
          _
        %s225 = sand.u32 %s30, 1
        %s226 = scalar_lea.sflag [#allocation3], %s225
        %s227 = sand.u32 %s30, 1
        %s228 = smul.addr %s227, 8
        %s229 = scalar_lea.vmem [#allocation2], %s228
        %p230 = pneg %p43
        %p231 = pneg %p40
        %p232 = pneg %p64
        %p233 = pneg %p61
        %p234 = pneg %p85
        %p235 = pneg %p82
        %p236 = pneg %p106
        %p237 = pneg %p103
        %p238 = pneg %p132
        %p239 = pneg %p129
        %s240 = sand.u32 %s119, 1
        %s241 = scalar_lea.sflag [#allocation4], %s240
        %s242 = sand.u32 %s119, 1
        %s243 = smul.addr %s242, 16
        %s244 = scalar_lea.vmem [#allocation8], %s243
        %s245 = smul.u32 2, %s22
        %s246 = smul.u32 2, %s22
        %v248 = vld [vmem:[%s212] sm:$0xf]
        %v249 = vld [vmem:[%s212 + $0x4] sm:$0xf]
        %v250 = vld [vmem:[#allocation5] sm:$0xf]
        %v251 = vld [vmem:[#allocation5 + $0x4] sm:$0xf]
        %v252 = vld [vmem:[#allocation5 + $0x8] sm:$0xf]
        %v253 = vld [vmem:[#allocation5 + $0xc] sm:$0xf]
        %v254 = vld [vmem:[#allocation5 + $0x10] sm:$0xf]
        %v255 = vld [vmem:[#allocation5 + $0x14] sm:$0xf]
        %v256 = vld [vmem:[#allocation5 + $0x18] sm:$0xf]
        %v257 = vld [vmem:[#allocation5 + $0x1c] sm:$0xf]
        %v258 = vld [vmem:[#allocation5 + $0x20] sm:$0xf]
        %v259 = vld [vmem:[#allocation5 + $0x24] sm:$0xf]
        %v260 = vld [vmem:[#allocation5 + $0x28] sm:$0xf]
        %v261 = vld [vmem:[#allocation5 + $0x2c] sm:$0xf]
        %v262 = vld [vmem:[#allocation5 + $0x30] sm:$0xf]
        %v263 = vld [vmem:[#allocation5 + $0x34] sm:$0xf]
        %v264 = vld [vmem:[#allocation5 + $0x38] sm:$0xf]
        %v265 = vld [vmem:[#allocation5 + $0x3c] sm:$0xf]
        %v266 = vld [vmem:[%s2] sm:$0x1]
        %v268 = vlaneseq
        %v269 = vshrl.u32 %v268, 7
        %v270 = vsub.s32 0, %v269
        %v271 = vrot.slane %v266, %v270
        %v275 = vunpack.c.l.b16 %v248
        %v276 = vunpack.c.l.b16 %v249
        %v277 = vpack.c.b16 %v276, %v275
        %v295 = vunpack.c.l.b16 %v250
        %v296 = vunpack.c.l.b16 %v251
        %v297 = vunpack.c.l.b16 %v252
        %v298 = vunpack.c.l.b16 %v253
        %v299 = vunpack.c.l.b16 %v254
        %v300 = vunpack.c.l.b16 %v255
        %v301 = vunpack.c.l.b16 %v256
        %v302 = vunpack.c.l.b16 %v257
        %v303 = vunpack.c.l.b16 %v258
        %v304 = vunpack.c.l.b16 %v259
        %v305 = vunpack.c.l.b16 %v260
        %v306 = vunpack.c.l.b16 %v261
        %v307 = vunpack.c.l.b16 %v262
        %v308 = vunpack.c.l.b16 %v263
        %v309 = vunpack.c.l.b16 %v264
        %v310 = vunpack.c.l.b16 %v265
        %v311 = vpack.c.b16 %v296, %v295
        %v312 = vpack.c.b16 %v298, %v297
        %v313 = vpack.c.b16 %v300, %v299
        %v314 = vpack.c.b16 %v302, %v301
        %v315 = vpack.c.b16 %v304, %v303
        %v316 = vpack.c.b16 %v306, %v305
        %v317 = vpack.c.b16 %v308, %v307
        %v318 = vpack.c.b16 %v310, %v309
        %327 = vmatprep.subr.bf16.mxu0 0
        %328 = vmatpush1.bf16.msra.mxu0 %v311
        %329 = vmatprep.subr.bf16.mxu0 0
        %330 = vmatpush1.bf16.msra.mxu0 %v312
        %331 = vmatprep.subr.bf16.mxu0 0
        %332 = vmatpush1.bf16.msra.mxu0 %v313
        %333 = vmatprep.subr.bf16.mxu0 0
        %334 = vmatpush1.bf16.msra.mxu0 %v314
        %335 = vmatprep.subr.bf16.mxu0 0
        %336 = vmatpush1.bf16.msra.mxu0 %v315
        %337 = vmatprep.subr.bf16.mxu0 0
        %338 = vmatpush1.bf16.msra.mxu0 %v316
        %339 = vmatprep.subr.bf16.mxu0 0
        %340 = vmatpush1.bf16.msra.mxu0 %v317
        %341 = vmatprep.subr.bf16.mxu0 0
        %342 = vmatpush1.bf16.msra.mxu0 %v318
        %343 = vmatprep.subr.bf16.mxu0 0
        %344 = vmatpush1.bf16.msra.mxu0 0
        %345 = vmatprep.subr.bf16.mxu0 0
        %346 = vmatpush1.bf16.msra.mxu0 0
        %347 = vmatprep.subr.bf16.mxu0 0
        %348 = vmatpush1.bf16.msra.mxu0 0
        %349 = vmatprep.subr.bf16.mxu0 0
        %350 = vmatpush1.bf16.msra.mxu0 0
        %351 = vmatprep.subr.bf16.mxu0 0
        %352 = vmatpush1.bf16.msra.mxu0 0
        %353 = vmatprep.subr.bf16.mxu0 0
        %354 = vmatpush1.bf16.msra.mxu0 0
        %355 = vmatprep.subr.bf16.mxu0 0
        %356 = vmatpush1.bf16.msra.mxu0 0
        %357 = vmatprep.subr.bf16.mxu0 0
        %358 = vmatpush1.bf16.msra.mxu0 0
        %359 = vmatprep.mubr.bf16.mxu0 0
        %360 = vmatmul.mubr.bf16.gmra.mrb[0].mxu0 %v277
        %v361 = vpop.f32.mrb[0].mxu0
        %v362 = vadd.f32 %v271, %v361
        %v363 = vpop.f32.mrb[0].mxu0
        %v364 = vpop.f32.mrb[0].mxu0
        %v365 = vadd.f32 %v271, %v364
        %v366 = vpop.f32.mrb[0].mxu0
        %367 = vdwg.mxu0
        %v368 = vld [vmem:[#allocation7] sm:$0xff]
        %v369 = vld [vmem:[#allocation7 + $0x8] sm:$0xff]
        %v370 = vadd.f32 %v362, %v368
        %v371 = vadd.f32 %v365, %v369
        %372 = vst [vmem:[%s244] sm:$0xff] %v370
        %373 = vst [vmem:[%s244 + $0x8] sm:$0xff] %v371
        %s374 = sand.u32 %s119, 1
        %s375 = scalar_lea.sflag [#allocation4], %s374
        %s376 = sand.u32 %s119, 1
        %s377 = smul.addr %s376, 16
        %s378 = scalar_lea.vmem [#allocation8], %s377
        // Predicated region
        $region49: #{tpu_custom_call.1} parent=35 // pred_check
          %p379 = pneg %p129
        $region50: #{tpu_custom_call.1} parent=35 // pred_check_branch
          %381 = sbr.rel (%p379) target = $region52
        $region51: #{tpu_custom_call.1} parent=35 // pred_region
          %s382 = smul.u32 2, %s22
          %s384 = ssub.s32 256, 256
          %385 = vsyncadd %s375, %s384
          %s386 = smul.addr %s382, 128
          %s387 = scalar_lea.hbm %s4, %s386
          %s388 = sshll.u32 %s378, 4
          %s389 = int_to_ptr.vmem [resolvable:$true] %s388
          %394 = dma.vmem_to_hbm [thread:$0]  %s389, 256, %s387, %s375, 128, 128, 8
        $region52: #{tpu_custom_call.1} parent=35 // pred_fallthru
          _
      $region36: #{tpu_custom_call.1} parent=5 // pred_fallthru
        _
      %p395 = scmp.le.s32.totalorder 2, %s17
      // Predicated region
      $region53: #{tpu_custom_call.1} parent=5 // pred_check
        %p396 = pneg %p395
      $region54: #{tpu_custom_call.1} parent=5 // pred_check_branch
        %398 = sbr.rel (%p396) target = $region56
      $region55: #{tpu_custom_call.1} parent=5 // pred_region
        %s399 = ssub.s32 %s17, 2
        // Predicated region
        $region57: #{tpu_custom_call.1} parent=55 // pred_check
          %p400 = pneg %p135
        $region58: #{tpu_custom_call.1} parent=55 // pred_check_branch
          %402 = sbr.rel (%p400) target = $region60
        $region59: #{tpu_custom_call.1} parent=55 // pred_region
          %s403 = sand.u32 %s120, 1
          %s404 = scalar_lea.sflag [#allocation4], %s403
          %s405 = sand.u32 %s120, 1
          %s406 = smul.addr %s405, 16
          %s407 = scalar_lea.vmem [#allocation8], %s406
          %408 = dma.done %s404, 256
        $region60: #{tpu_custom_call.1} parent=55 // pred_fallthru
          _
      $region56: #{tpu_custom_call.1} parent=5 // pred_fallthru
        _
    $region6: #{tpu_custom_call.1} parent=1 // loop_footer
      %s21 = sadd.s32 1, %s17
    $region7: #{tpu_custom_call.1} parent=1 // loop_footer_branch
      %16 = sbr.rel target = $region3
    $region8: #{tpu_custom_call.1} parent=1 // loop_exit
      _
    %409 = vsyncpa [#allocation3], 1
    %s410 = scalar_lea.sflag [#allocation3], 1
    %411 = vsyncpa %s410, 1
    %412 = vsyncpa [#allocation6], 1
    %413 = vsyncpa [#allocation4], 1
    %s414 = scalar_lea.sflag [#allocation4], 1
    %415 = vsyncpa %s414, 1

</llo_original>
